<compile_context>
chip_gen: v5e
topology: v5e:2x2
jax: 0.10.0
libtpu: 0.0.40
codegen_flags: <defaults>
</compile_context>

<pallas_src>
import jax
import jax.numpy as jnp
import numpy as np
from jax.experimental import pallas as pl
from jax.experimental.pallas import tpu as pltpu

# ---------------- configuration (synthetic, deterministic) -----------------
POS_DIM = 2                      # after removing the z dimension
ROT_DIM = 4                      # quaternion
HIDDEN = 32                      # ContinuousActionEmbedding hidden dim
PER_POSE_EMB = 32                # ContinuousActionEmbedding output dim
POST_DIM = 32                    # post_layer output dim (model embed dim)
COMBINED = 4 * PER_POSE_EMB      # 128
FUSED_HIDDEN = 4 * HIDDEN        # 128
IN_FEATS = 2 * POS_DIM + 2 * ROT_DIM   # 12

POS_LOW = np.array([0.25, -0.5], np.float32)
POS_HIGH = np.array([0.75, 0.5], np.float32)
ROT_LOW = np.array([-1.0] * ROT_DIM, np.float32)
ROT_HIGH = np.array([1.0] * ROT_DIM, np.float32)

_KEY_ORDER = ("pose0_position", "pose0_rotation", "pose1_position", "pose1_rotation")
_FEAT_DIMS = (POS_DIM, ROT_DIM, POS_DIM, ROT_DIM)


# ------------------------------- kernel ------------------------------------
def _action_embed_kernel(x_ref, low_ref, high_ref, w1_ref, w23_ref,
                         b1_ref, b23_ref, out_ref):
    """clip -> fused (normalize-folded) Linear -> ReLU -> fused (W2@Wpost) Linear."""
    xc = jnp.clip(x_ref[...], low_ref[...], high_ref[...])       # (tile, 12)
    h = jnp.maximum(
        jnp.dot(xc, w1_ref[...], preferred_element_type=jnp.float32) + b1_ref[...],
        0.0,
    )                                                             # (tile, 128)
    out_ref[...] = (
        jnp.dot(h, w23_ref[...], preferred_element_type=jnp.float32) + b23_ref[...]
    )                                                             # (tile, 32)


# --------------------------- parameter helpers ------------------------------
def make_params(key):
    """Deterministic synthetic parameters. Weights stored as (in, out)."""
    params = {}
    dims = dict(zip(_KEY_ORDER, _FEAT_DIMS))
    for i, (name, in_dim) in enumerate(sorted(dims.items())):
        k1, k2 = jax.random.split(jax.random.fold_in(key, i))
        params[name] = {
            "w1": jax.random.normal(k1, (in_dim, HIDDEN), jnp.float32) * 0.1,
            "b1": jnp.zeros((1, HIDDEN), jnp.float32) + 0.01,
            "w2": jax.random.normal(k2, (HIDDEN, PER_POSE_EMB), jnp.float32) * 0.1,
            "b2": jnp.zeros((1, PER_POSE_EMB), jnp.float32) + 0.02,
        }
    kp = jax.random.fold_in(key, 99)
    params["post_w"] = jax.random.normal(kp, (COMBINED, POST_DIM), jnp.float32) * 0.1
    params["post_b"] = jnp.zeros((1, POST_DIM), jnp.float32) + 0.03
    return params


def prepare_fused_params(params):
    """Fuse the 4 per-pose MLPs into block-diagonal slabs, fold normalization
    into the first linear, and fold the second linear into the post layer."""
    low = np.concatenate([POS_LOW, ROT_LOW, POS_LOW, ROT_LOW]).astype(np.float32)
    high = np.concatenate([POS_HIGH, ROT_HIGH, POS_HIGH, ROT_HIGH]).astype(np.float32)
    scale = 2.0 / (high - low)                    # normalize(x) = scale*clip(x) + offset
    offset = -2.0 * low / (high - low) - 1.0

    w1_fused = jnp.zeros((IN_FEATS, FUSED_HIDDEN), jnp.float32)
    w2_fused = jnp.zeros((FUSED_HIDDEN, COMBINED), jnp.float32)
    b1_parts, b2_parts = [], []
    feat_off = 0
    for idx, name in enumerate(_KEY_ORDER):       # sorted key order
        p = params[name]
        d = _FEAT_DIMS[idx]
        h0 = idx * HIDDEN
        e0 = idx * PER_POSE_EMB
        w1_fused = w1_fused.at[feat_off:feat_off + d, h0:h0 + HIDDEN].set(p["w1"])
        w2_fused = w2_fused.at[h0:h0 + HIDDEN, e0:e0 + PER_POSE_EMB].set(p["w2"])
        b1_parts.append(p["b1"][0])
        b2_parts.append(p["b2"][0])
        feat_off += d
    b1_fused = jnp.concatenate(b1_parts)          # (128,)
    b2_fused = jnp.concatenate(b2_parts)          # (128,)

    # fold normalization affine into the first linear
    scale_j = jnp.asarray(scale)
    offset_j = jnp.asarray(offset)
    w1_folded = scale_j[:, None] * w1_fused       # diag(scale) @ W1
    b1_folded = offset_j @ w1_fused + b1_fused    # offset @ W1 + b1

    # exact fold: no activation between the 2nd linear and post_layer
    w23 = w2_fused @ params["post_w"]                     # (128, 32)
    b23 = b2_fused @ params["post_w"] + params["post_b"][0]  # (32,)

    return {
        "low": jnp.asarray(low)[None, :],         # (1, 12)
        "high": jnp.asarray(high)[None, :],       # (1, 12)
        "w1": w1_folded,                          # (12, 128)
        "w23": w23,                               # (128, 32)
        "b1": b1_folded[None, :],                 # (1, 128)
        "b23": b23[None, :],                      # (1, 32)
    }


# ------------------------------- wrapper ------------------------------------
def _round_up(a, b):
    return (a + b - 1) // b * b


def _choose_tile(m, token_tile):
    """Largest tile <= token_tile, balanced into an even number of grid steps
    when m > token_tile (keeps both v7x TensorCores busy)."""
    m8 = _round_up(max(m, 1), 8)
    if m8 <= token_tile:
        return m8
    n_steps = -(-m8 // token_tile)
    if n_steps % 2:
        n_steps += 1
    return _round_up(-(-m8 // n_steps), 8)


def vima_continuous_action_embedder(continuous_actions, fused_params, *, token_tile=4096):
    """Glue (z-dim removal, packing, padding) + fused Pallas kernel."""
    # forward-pre-hook: drop the z dimension of the positions.
    p0 = continuous_actions["pose0_position"][..., :POS_DIM]
    r0 = continuous_actions["pose0_rotation"]
    p1 = continuous_actions["pose1_position"][..., :POS_DIM]
    r1 = continuous_actions["pose1_rotation"]

    lead_shape = p0.shape[:-1]                     # (B, S)
    m = int(np.prod(lead_shape))

    # pack all pose-action features into one (M, 12) slab (sorted key order)
    x = jnp.concatenate([p0, r0, p1, r1], axis=-1).reshape(m, IN_FEATS).astype(jnp.float32)

    tile = _choose_tile(m, int(token_tile))
    m_pad = _round_up(m, tile)
    if m_pad != m:
        x = jnp.pad(x, ((0, m_pad - m), (0, 0)))   # ragged tail -> zero-padded rows

    # in+out blocks lane-pad to 128 lanes; double-buffered footprint ~2*tile KiB.
    # Only bump the scoped-VMEM limit when the default would be exceeded
    # (tile=4096 fits every generation's default).
    est_block_vmem = 2 * 2 * tile * 128 * 4
    compiler_kwargs = dict(dimension_semantics=("parallel",))
    if est_block_vmem > 12 * 1024 * 1024:
        compiler_kwargs["vmem_limit_bytes"] = est_block_vmem + (4 << 20)

    def const_spec(shape):
        return pl.BlockSpec(shape, lambda i: (0, 0))

    out = pl.pallas_call(
        _action_embed_kernel,
        out_shape=jax.ShapeDtypeStruct((m_pad, POST_DIM), jnp.float32),
        grid_spec=pltpu.PrefetchScalarGridSpec(
            num_scalar_prefetch=0,
            grid=(m_pad // tile,),
            in_specs=[
                pl.BlockSpec((tile, IN_FEATS), lambda i: (i, 0)),
                const_spec((1, IN_FEATS)),
                const_spec((1, IN_FEATS)),
                const_spec((IN_FEATS, FUSED_HIDDEN)),
                const_spec((FUSED_HIDDEN, POST_DIM)),
                const_spec((1, FUSED_HIDDEN)),
                const_spec((1, POST_DIM)),
            ],
            out_specs=pl.BlockSpec((tile, POST_DIM), lambda i: (i, 0)),
        ),
        compiler_params=pltpu.CompilerParams(**compiler_kwargs),
    )(x, fused_params["low"], fused_params["high"], fused_params["w1"],
      fused_params["w23"], fused_params["b1"], fused_params["b23"])

    # drop padding, then fused_embedding.unsqueeze(-2)
    return out[:m].reshape(*lead_shape, 1, POST_DIM)


# ------------------------------ reference -----------------------------------
def _reference(continuous_actions, params):
    """Pure-JAX reference mirroring the PyTorch forward (no fusion)."""
    def norm(x, low, high):
        lo, hi = jnp.asarray(low), jnp.asarray(high)
        x = jnp.clip(x, lo, hi)
        return (x - lo) / (hi - lo) * 2.0 - 1.0

    def mlp(x, p):
        h = jnp.maximum(x @ p["w1"] + p["b1"][0], 0.0)
        return h @ p["w2"] + p["b2"][0]

    p0 = norm(continuous_actions["pose0_position"][..., :POS_DIM], POS_LOW, POS_HIGH)
    r0 = norm(continuous_actions["pose0_rotation"], ROT_LOW, ROT_HIGH)
    p1 = norm(continuous_actions["pose1_position"][..., :POS_DIM], POS_LOW, POS_HIGH)
    r1 = norm(continuous_actions["pose1_rotation"], ROT_LOW, ROT_HIGH)
    combined = jnp.concatenate(
        [mlp(p0, params["pose0_position"]), mlp(r0, params["pose0_rotation"]),
         mlp(p1, params["pose1_position"]), mlp(r1, params["pose1_rotation"])],
        axis=-1,
    )
    fused = combined @ params["post_w"] + params["post_b"][0]
    return fused[..., None, :]


if __name__ == "__main__":
    key = jax.random.PRNGKey(0)
    B, S = 2, 8
    k_in = jax.random.fold_in(key, 1234)
    ks = jax.random.split(k_in, 4)
    continuous_actions = {
        # positions carry a z dimension (3) that the forward-pre-hook removes
        "pose0_position": jax.random.uniform(ks[0], (B, S, 3), jnp.float32, 0.0, 1.0),
        "pose0_rotation": jax.random.uniform(ks[1], (B, S, 4), jnp.float32, -1.0, 1.0),
        "pose1_position": jax.random.uniform(ks[2], (B, S, 3), jnp.float32, 0.0, 1.0),
        "pose1_rotation": jax.random.uniform(ks[3], (B, S, 4), jnp.float32, -1.0, 1.0),
    }
    params = make_params(key)
    fused_params = prepare_fused_params(params)

    out = vima_continuous_action_embedder(continuous_actions, fused_params)
    out = jax.block_until_ready(out)
    assert out.shape == (B, S, 1, POST_DIM), out.shape

    ref = _reference(continuous_actions, params)
    # W2@Wpost fold reassociates fp32 sums -> slightly looser tolerance
    np.testing.assert_allclose(np.asarray(out), np.asarray(ref), rtol=1e-4, atol=1e-4)

    print("KERNEL_OK")
</pallas_src>

<mosaic_0001>
module attributes {stable_mosaic.version = 11 : i64} {
  func.func @_action_embed_kernel(%arg0: i32, %arg1: memref<16x12xf32, #tpu.memory_space<vmem>>, %arg2: memref<1x12xf32, #tpu.memory_space<vmem>>, %arg3: memref<1x12xf32, #tpu.memory_space<vmem>>, %arg4: memref<12x128xf32, #tpu.memory_space<vmem>>, %arg5: memref<128x32xf32, #tpu.memory_space<vmem>>, %arg6: memref<1x128xf32, #tpu.memory_space<vmem>>, %arg7: memref<1x32xf32, #tpu.memory_space<vmem>>, %arg8: memref<16x32xf32, #tpu.memory_space<vmem>>) attributes {dimension_semantics = [#tpu.dimension_semantics<parallel>], iteration_bounds = array<i64: 1>, scalar_prefetch = 0 : i64, scratch_operands = 0 : i64, tpu.core_type = #tpu.core_type<tc>, window_params = [{transform_indices = @transform_0, window_bounds = array<i64: 16, 12>}, {pipeline_mode = #tpu.pipeline_mode<synchronous>, transform_indices = @transform_1, window_bounds = array<i64: 1, 12>}, {pipeline_mode = #tpu.pipeline_mode<synchronous>, transform_indices = @transform_2, window_bounds = array<i64: 1, 12>}, {pipeline_mode = #tpu.pipeline_mode<synchronous>, transform_indices = @transform_3, window_bounds = array<i64: 12, 128>}, {pipeline_mode = #tpu.pipeline_mode<synchronous>, transform_indices = @transform_4, window_bounds = array<i64: 128, 32>}, {pipeline_mode = #tpu.pipeline_mode<synchronous>, transform_indices = @transform_5, window_bounds = array<i64: 1, 128>}, {pipeline_mode = #tpu.pipeline_mode<synchronous>, transform_indices = @transform_6, window_bounds = array<i64: 1, 32>}, {transform_indices = @transform_7, window_bounds = array<i64: 16, 32>}]} {
    %c0 = arith.constant 0 : index
    %c0_0 = arith.constant 0 : index
    %0 = vector.load %arg1[%c0, %c0_0] : memref<16x12xf32, #tpu.memory_space<vmem>>, vector<16x12xf32>
    %c0_1 = arith.constant 0 : index
    %c0_2 = arith.constant 0 : index
    %1 = vector.load %arg2[%c0_1, %c0_2] : memref<1x12xf32, #tpu.memory_space<vmem>>, vector<1x12xf32>
    %c0_3 = arith.constant 0 : index
    %c0_4 = arith.constant 0 : index
    %2 = vector.load %arg3[%c0_3, %c0_4] : memref<1x12xf32, #tpu.memory_space<vmem>>, vector<1x12xf32>
    %3 = vector.broadcast %1 : vector<1x12xf32> to vector<16x12xf32>
    %4 = arith.maximumf %3, %0 : vector<16x12xf32>
    %5 = vector.broadcast %2 : vector<1x12xf32> to vector<16x12xf32>
    %6 = arith.minimumf %5, %4 : vector<16x12xf32>
    %c0_5 = arith.constant 0 : index
    %c0_6 = arith.constant 0 : index
    %7 = vector.load %arg4[%c0_5, %c0_6] : memref<12x128xf32, #tpu.memory_space<vmem>>, vector<12x128xf32>
    %cst = arith.constant dense<0.000000e+00> : vector<16x128xf32>
    %8 = tpu.matmul %6, %7, %cst {dimension_numbers = #tpu.dot_dimension_numbers<[1], [0], [0], [1], [0, 0, 1, 1], [], []>} : vector<16x12xf32>, vector<12x128xf32>, vector<16x128xf32> -> vector<16x128xf32>
    %c0_7 = arith.constant 0 : index
    %c0_8 = arith.constant 0 : index
    %9 = vector.load %arg6[%c0_7, %c0_8] : memref<1x128xf32, #tpu.memory_space<vmem>>, vector<1x128xf32>
    %10 = vector.broadcast %9 : vector<1x128xf32> to vector<16x128xf32>
    %11 = arith.addf %8, %10 : vector<16x128xf32>
    %cst_9 = arith.constant 0.000000e+00 : f32
    %12 = vector.broadcast %cst_9 : f32 to vector<16x128xf32>
    %13 = arith.maximumf %11, %12 : vector<16x128xf32>
    %c0_10 = arith.constant 0 : index
    %c0_11 = arith.constant 0 : index
    %14 = vector.load %arg5[%c0_10, %c0_11] : memref<128x32xf32, #tpu.memory_space<vmem>>, vector<128x32xf32>
    %cst_12 = arith.constant dense<0.000000e+00> : vector<16x32xf32>
    %15 = tpu.matmul %13, %14, %cst_12 {dimension_numbers = #tpu.dot_dimension_numbers<[1], [0], [0], [1], [0, 0, 1, 1], [], []>} : vector<16x128xf32>, vector<128x32xf32>, vector<16x32xf32> -> vector<16x32xf32>
    %c0_13 = arith.constant 0 : index
    %c0_14 = arith.constant 0 : index
    %16 = vector.load %arg7[%c0_13, %c0_14] : memref<1x32xf32, #tpu.memory_space<vmem>>, vector<1x32xf32>
    %17 = vector.broadcast %16 : vector<1x32xf32> to vector<16x32xf32>
    %18 = arith.addf %15, %17 : vector<16x32xf32>
    %c0_15 = arith.constant 0 : index
    %c0_16 = arith.constant 0 : index
    %19 = vector.load %arg8[%c0_15, %c0_16] : memref<16x32xf32, #tpu.memory_space<vmem>>, vector<16x32xf32>
    tpu.vector_store %arg8[%c0_15, %c0_16], %18 {strides = array<i32>} : memref<16x32xf32, #tpu.memory_space<vmem>>, vector<16x32xf32>,
    return
  }
  func.func @transform_0(%arg0: i32) -> (i32, i32) {
    %c0_i32 = arith.constant 0 : i32
    %c0_i32_0 = arith.constant 0 : i32
    return %arg0, %c0_i32 : i32, i32
  }
  func.func @transform_1(%arg0: i32) -> (i32, i32) {
    %c0_i32 = arith.constant 0 : i32
    %c0_i32_0 = arith.constant 0 : i32
    %c0_i32_1 = arith.constant 0 : i32
    return %c0_i32, %c0_i32_0 : i32, i32
  }
  func.func @transform_2(%arg0: i32) -> (i32, i32) {
    %c0_i32 = arith.constant 0 : i32
    %c0_i32_0 = arith.constant 0 : i32
    %c0_i32_1 = arith.constant 0 : i32
    return %c0_i32, %c0_i32_0 : i32, i32
  }
  func.func @transform_3(%arg0: i32) -> (i32, i32) {
    %c0_i32 = arith.constant 0 : i32
    %c0_i32_0 = arith.constant 0 : i32
    %c0_i32_1 = arith.constant 0 : i32
    return %c0_i32, %c0_i32_0 : i32, i32
  }
  func.func @transform_4(%arg0: i32) -> (i32, i32) {
    %c0_i32 = arith.constant 0 : i32
    %c0_i32_0 = arith.constant 0 : i32
    %c0_i32_1 = arith.constant 0 : i32
    return %c0_i32, %c0_i32_0 : i32, i32
  }
  func.func @transform_5(%arg0: i32) -> (i32, i32) {
    %c0_i32 = arith.constant 0 : i32
    %c0_i32_0 = arith.constant 0 : i32
    %c0_i32_1 = arith.constant 0 : i32
    return %c0_i32, %c0_i32_0 : i32, i32
  }
  func.func @transform_6(%arg0: i32) -> (i32, i32) {
    %c0_i32 = arith.constant 0 : i32
    %c0_i32_0 = arith.constant 0 : i32
    %c0_i32_1 = arith.constant 0 : i32
    return %c0_i32, %c0_i32_0 : i32, i32
  }
  func.func @transform_7(%arg0: i32) -> (i32, i32) {
    %c0_i32 = arith.constant 0 : i32
    %c0_i32_0 = arith.constant 0 : i32
    return %arg0, %c0_i32 : i32, i32
  }
}

</mosaic_0001>

<llo_original>
// kernel: tpu_custom_call.1
$region0: #{tpu_custom_call.1}
  #allocation0 [shape = 'u32[]', space=smem, size = 0x4, offset = 0x4, fixed_abs, tag = 'smem constant byte address 0x4 - core index']
  #allocation1 [shape = 'u32[72,128]{1,0:T(1,128)}', space=vmem, size = 0x9000, scoped, tag = 'internal scratch']
  %s0 = inlined_call_operand.vmem [shape: f32[16,12], index: 0, kind: input, shape index: {}]
  %s1 = inlined_call_operand.vmem [shape: f32[1,12], index: 1, kind: input, shape index: {}]
  %s2 = inlined_call_operand.vmem [shape: f32[1,12], index: 2, kind: input, shape index: {}]
  %s3 = inlined_call_operand.vmem [shape: f32[12,128], index: 3, kind: input, shape index: {}]
  %s4 = inlined_call_operand.vmem [shape: f32[128,32], index: 4, kind: input, shape index: {}]
  %s5 = inlined_call_operand.vmem [shape: f32[1,128], index: 5, kind: input, shape index: {}]
  %s6 = inlined_call_operand.vmem [shape: f32[1,32], index: 6, kind: input, shape index: {}]
  %s7 = inlined_call_operand.hbm [shape: f32[16,32], index: 7, kind: output, shape index: {}]
  %s8 = sld [smem:[#allocation0]]
  $region38: #{tpu_custom_call.1} parent=0
    _
  %s10 = ssub.s32 1, %s8
  %s11 = scalar_select 0, %s10, %s8
  $region1: #{tpu_custom_call.1} parent=0
    #allocation2 [shape = 'u8[8192]{0}', space=vmem, size = 0x2000, scoped, tag = 'output window, operand 0, single buffered']
    #allocation3 [shape = 's32[1]{0}', space=sflag, size = 0x4, scoped, tag = 'scoped memory for tpu_custom_call.1']
    %12 = vsyncpa [#allocation3], 0
    // Predicated region
    $region2: #{tpu_custom_call.1} parent=1 // pred_check
      _
    $region3: #{tpu_custom_call.1} parent=1 // pred_check_branch
      %14 = sbr.rel (0) target = $region5
    $region4: #{tpu_custom_call.1} parent=1 // pred_region
      _
    $region5: #{tpu_custom_call.1} parent=1 // pred_fallthru
      _
    // Predicated region
    $region6: #{tpu_custom_call.1} parent=1 // pred_check
      _
    $region7: #{tpu_custom_call.1} parent=1 // pred_check_branch
      %16 = sbr.rel (0) target = $region9
    $region8: #{tpu_custom_call.1} parent=1 // pred_region
      _
    $region9: #{tpu_custom_call.1} parent=1 // pred_fallthru
      _
    // Predicated region
    $region10: #{tpu_custom_call.1} parent=1 // pred_check
      _
    $region11: #{tpu_custom_call.1} parent=1 // pred_check_branch
      %18 = sbr.rel (0) target = $region13
    $region12: #{tpu_custom_call.1} parent=1 // pred_region
      _
    $region13: #{tpu_custom_call.1} parent=1 // pred_fallthru
      _
    // Predicated region
    $region14: #{tpu_custom_call.1} parent=1 // pred_check
      _
    $region15: #{tpu_custom_call.1} parent=1 // pred_check_branch
      %20 = sbr.rel (0) target = $region17
    $region16: #{tpu_custom_call.1} parent=1 // pred_region
      _
    $region17: #{tpu_custom_call.1} parent=1 // pred_fallthru
      _
    // Predicated region
    $region18: #{tpu_custom_call.1} parent=1 // pred_check
      _
    $region19: #{tpu_custom_call.1} parent=1 // pred_check_branch
      %22 = sbr.rel (0) target = $region21
    $region20: #{tpu_custom_call.1} parent=1 // pred_region
      _
    $region21: #{tpu_custom_call.1} parent=1 // pred_fallthru
      _
    // Predicated region
    $region22: #{tpu_custom_call.1} parent=1 // pred_check
      _
    $region23: #{tpu_custom_call.1} parent=1 // pred_check_branch
      %24 = sbr.rel (0) target = $region25
    $region24: #{tpu_custom_call.1} parent=1 // pred_region
      _
    $region25: #{tpu_custom_call.1} parent=1 // pred_fallthru
      _
    // Predicated region
    $region26: #{tpu_custom_call.1} parent=1 // pred_check
      _
    $region27: #{tpu_custom_call.1} parent=1 // pred_check_branch
      %26 = sbr.rel (0) target = $region29
    $region28: #{tpu_custom_call.1} parent=1 // pred_region
      _
    $region29: #{tpu_custom_call.1} parent=1 // pred_fallthru
      _
    %v27 = vld [vmem:[%s0] sm:$0xff]
    %v28 = vld [vmem:[%s0 + $0x8] sm:$0xff]
    %v29 = vld [vmem:[%s1] sm:$0x1]
    %v30 = vld [vmem:[%s2] sm:$0x1]
    %v32 = vperm.slane %v29, 0
    %v34 = vmax.f32 %v32, %v27
    %v35 = vmax.f32 %v32, %v28
    %v37 = vperm.slane %v30, 0
    %v39 = vmin.f32 %v37, %v34
    %v40 = vmin.f32 %v37, %v35
    %v41 = vld [vmem:[%s3] sm:$0xff]
    %v42 = vld [vmem:[%s3 + $0x8] sm:$0xf]
    %v43 = vld [vmem:[%s5] sm:$0x1]
    %v45 = vperm.slane %v43, 0
    %vm47 = vcmask 97280
    %v49 = vsel %vm47, %v39, 0
    %v52 = vsel %vm47, %v40, 0
    %vm54 = vcmask 1043456
    %v56 = vsel %vm54, %v42, 0
    %58 = vmatpush.msra.mxu0 0.0
    %59 = vmatpush.msra.mxu0 0.0
    %60 = vmatpush.msra.mxu0 0.0
    %61 = vmatpush.msra.mxu0 0.0
    %62 = vmatpush.msra.mxu0 0.0
    %63 = vmatpush.msra.mxu0 0.0
    %64 = vmatpush.msra.mxu0 0.0
    %65 = vmatpush.msra.mxu0 0.0
    %66 = vmatpush.msra.mxu0 0.0
    %67 = vmatpush.msra.mxu0 0.0
    %68 = vmatpush.msra.mxu0 0.0
    %69 = vmatpush.msra.mxu0 0.0
    %70 = vmatpush.msra.mxu0 0.0
    %71 = vmatpush.msra.mxu0 0.0
    %72 = vmatpush.msra.mxu0 %v56
    %73 = vmatpush.msra.mxu0 %v41
    %74 = vmatmul.f32.gmra.mxu0 %v49
    %v75 = vpop.f32.mrf.mxu0
    %v76 = vadd.f32 %v45, %v75
    %77 = vmatmul.f32.gmra.mxu0 %v52
    %v78 = vpop.f32.mrf.mxu0
    %v79 = vadd.f32 %v45, %v78
    %80 = vdwg.mxu0
    %v81 = vmax.f32 %v76, 0.0
    %v82 = vmax.f32 %v79, 0.0
    %v83 = vld [vmem:[%s4] sm:$0xff]
    %v84 = vld [vmem:[%s4 + $0x8] sm:$0xff]
    %v85 = vld [vmem:[%s4 + $0x10] sm:$0xff]
    %v86 = vld [vmem:[%s4 + $0x18] sm:$0xff]
    %v87 = vld [vmem:[%s4 + $0x20] sm:$0xff]
    %v88 = vld [vmem:[%s4 + $0x28] sm:$0xff]
    %v89 = vld [vmem:[%s4 + $0x30] sm:$0xff]
    %v90 = vld [vmem:[%s4 + $0x38] sm:$0xff]
    %v91 = vld [vmem:[%s4 + $0x40] sm:$0xff]
    %v92 = vld [vmem:[%s4 + $0x48] sm:$0xff]
    %v93 = vld [vmem:[%s4 + $0x50] sm:$0xff]
    %v94 = vld [vmem:[%s4 + $0x58] sm:$0xff]
    %v95 = vld [vmem:[%s4 + $0x60] sm:$0xff]
    %v96 = vld [vmem:[%s4 + $0x68] sm:$0xff]
    %v97 = vld [vmem:[%s4 + $0x70] sm:$0xff]
    %v98 = vld [vmem:[%s4 + $0x78] sm:$0xff]
    %v99 = vld [vmem:[%s6] sm:$0x1]
    %v101 = vperm.slane %v99, 0
    %103 = vmatpush.msra.mxu0 %v98
    %104 = vmatpush.msra.mxu0 %v97
    %105 = vmatpush.msra.mxu0 %v96
    %106 = vmatpush.msra.mxu0 %v95
    %107 = vmatpush.msra.mxu0 %v94
    %108 = vmatpush.msra.mxu0 %v93
    %109 = vmatpush.msra.mxu0 %v92
    %110 = vmatpush.msra.mxu0 %v91
    %111 = vmatpush.msra.mxu0 %v90
    %112 = vmatpush.msra.mxu0 %v89
    %113 = vmatpush.msra.mxu0 %v88
    %114 = vmatpush.msra.mxu0 %v87
    %115 = vmatpush.msra.mxu0 %v86
    %116 = vmatpush.msra.mxu0 %v85
    %117 = vmatpush.msra.mxu0 %v84
    %118 = vmatpush.msra.mxu0 %v83
    %119 = vmatmul.f32.gmra.mxu0 %v81
    %v120 = vpop.f32.mrf.mxu0
    %v121 = vadd.f32 %v101, %v120
    %122 = vmatmul.f32.gmra.mxu0 %v82
    %v123 = vpop.f32.mrf.mxu0
    %v124 = vadd.f32 %v101, %v123
    %125 = vdwg.mxu0
    %vm126 = vcmask 261120
    %127 = vst.msk [vmem:[#allocation2] sm:$0xff] %vm126, %v121
    %128 = vst.msk [vmem:[#allocation2 + $0x8] sm:$0xff] %vm126, %v124
    // Predicated region
    $region30: #{tpu_custom_call.1} parent=1 // pred_check
      _
    $region31: #{tpu_custom_call.1} parent=1 // pred_check_branch
      %130 = sbr.rel (0) target = $region33
    $region32: #{tpu_custom_call.1} parent=1 // pred_region
      %132 = vsyncadd [#allocation3], 0
      %s133 = sshll.u32 [#allocation2], 4
      %s134 = int_to_ptr.vmem [resolvable:$true] %s133
      %s135 = sshll.u32 %s7, 4
      %s136 = int_to_ptr.hbm [resolvable:$true] %s135
      %141 = dma.vmem_to_hbm [thread:$0]  %s134, 256, %s136, [#allocation3], 128, 128, 8
    $region33: #{tpu_custom_call.1} parent=1 // pred_fallthru
      _
    // Predicated region
    $region34: #{tpu_custom_call.1} parent=1 // pred_check
      _
    $region35: #{tpu_custom_call.1} parent=1 // pred_check_branch
      %143 = sbr.rel (0) target = $region37
    $region36: #{tpu_custom_call.1} parent=1 // pred_region
      %145 = dma.done [#allocation3], 256
    $region37: #{tpu_custom_call.1} parent=1 // pred_fallthru
      _
    %146 = vsyncpa [#allocation3], 1

</llo_original>
